<compile_context>
chip_gen: v6e
topology: v6e:2x2x1
jax: 0.10.0
libtpu: 0.0.40
codegen_flags: <defaults>
</compile_context>

<pallas_src>
import functools

import jax
import jax.numpy as jnp
from jax.experimental import pallas as pl
from jax.experimental.pallas import tpu as pltpu


def _round_up(v, m):
    return (v + m - 1) // m * m


def rnn_dense_kernel(x_ref, wih_t_ref, whh_t_ref, b_ref, wd_t_ref, bd_ref,
                     out_ref, *, seq_len, batch):
    """Whole forward pass in one invocation.

    x_ref    : (T*N, D)  time-major flattened input (row t*N + n == x[n, t, :])
    wih_t_ref: (D, M)    W_ih^T
    whh_t_ref: (M, M)    W_hh^T
    b_ref    : (1, M)    b_ih + b_hh
    wd_t_ref : (M, Kp)   W_dense^T, zero-padded to lane-dense Kp (multiple of 128)
    bd_ref   : (1, Kp)   b_dense, zero-padded
    out_ref  : (N, Kp)   dense-head output (padded; wrapper slices [:, :K])
    """
    # Hoisted input projection for all time steps at once (+ combined RNN bias).
    u = (jnp.dot(x_ref[...], wih_t_ref[...], preferred_element_type=jnp.float32)
         + b_ref[...])                      # (T*N, M)

    whh_t = whh_t_ref[...]                  # (M, M), loaded once

    # Recurrence: seq_len is a compile-time constant, so the loop is fully
    # unrolled at trace time; h stays in vregs (no VMEM round trips, no init branch).
    h = jnp.zeros((batch, whh_t.shape[0]), jnp.float32)
    for t in range(seq_len):
        pre = u[t * batch:(t + 1) * batch, :] + jnp.dot(
            h, whh_t, preferred_element_type=jnp.float32)
        h = jnp.maximum(pre, 0.0)           # nonlinearity='relu'

    # Dense head on the final hidden state (== rnn_out[:, -1, :]); lane-dense store.
    out_ref[...] = (jnp.dot(h, wd_t_ref[...], preferred_element_type=jnp.float32)
                    + bd_ref[...]).astype(out_ref.dtype)


def rnn_model_forward(x, w_ih, w_hh, b_ih, b_hh, w_dense, b_dense):
    """x: (N, T, D) float32 (batch_first, like the PyTorch module). Returns (N, K)."""
    N, T, D = x.shape
    M = w_ih.shape[0]
    K = w_dense.shape[0]
    Kp = _round_up(K, 128)

    # Host-side layout plumbing (free): time-major flatten, pre-transposed weights,
    # combined RNN bias, zero-padded lane-dense dense head.
    x_flat = jnp.transpose(x, (1, 0, 2)).reshape(T * N, D)            # (T*N, D)
    wih_t = jnp.asarray(w_ih.T, jnp.float32)                          # (D, M)
    whh_t = jnp.asarray(w_hh.T, jnp.float32)                          # (M, M)
    b_comb = (b_ih + b_hh).reshape(1, M).astype(jnp.float32)          # (1, M)
    wd_t = jnp.zeros((M, Kp), jnp.float32).at[:, :K].set(w_dense.T)   # (M, Kp)
    bd = jnp.zeros((1, Kp), jnp.float32).at[:, :K].set(b_dense.reshape(1, K))

    kernel = functools.partial(rnn_dense_kernel, seq_len=T, batch=N)
    vmem_spec = pl.BlockSpec(memory_space=pltpu.MemorySpace.VMEM)

    out_padded = pl.pallas_call(
        kernel,
        out_shape=jax.ShapeDtypeStruct((N, Kp), jnp.float32),
        in_specs=[vmem_spec] * 6,
        out_specs=vmem_spec,
    )(x_flat, wih_t, whh_t, b_comb, wd_t, bd)

    return out_padded[:, :K]


def reference_forward(x, w_ih, w_hh, b_ih, b_hh, w_dense, b_dense):
    """Pure-JAX reference matching torch.nn.RNN(relu, batch_first) + Linear on last step."""
    N, T, D = x.shape
    M = w_ih.shape[0]
    h = jnp.zeros((N, M), jnp.float32)
    for t in range(T):
        h = jnp.maximum(x[:, t, :] @ w_ih.T + b_ih + h @ w_hh.T + b_hh, 0.0)
    return h @ w_dense.T + b_dense


if __name__ == "__main__":
    # Small shapes consistent with the module: x is (batch, seq, n_inputs).
    N, T, D, M, K = 2, 8, 4, 32, 3   # batch, seq, n_inputs, n_hidden, n_outputs (L=1)

    key = jax.random.PRNGKey(0)
    k = jax.random.split(key, 7)
    bound = 1.0 / jnp.sqrt(M)

    x = jax.random.normal(k[0], (N, T, D), dtype=jnp.float32)
    w_ih = jax.random.uniform(k[1], (M, D), minval=-bound, maxval=bound, dtype=jnp.float32)
    w_hh = jax.random.uniform(k[2], (M, M), minval=-bound, maxval=bound, dtype=jnp.float32)
    b_ih = jax.random.uniform(k[3], (M,), minval=-bound, maxval=bound, dtype=jnp.float32)
    b_hh = jax.random.uniform(k[4], (M,), minval=-bound, maxval=bound, dtype=jnp.float32)
    w_dense = jax.random.uniform(k[5], (K, M), minval=-bound, maxval=bound, dtype=jnp.float32)
    b_dense = jax.random.uniform(k[6], (K,), minval=-bound, maxval=bound, dtype=jnp.float32)

    out = rnn_model_forward(x, w_ih, w_hh, b_ih, b_hh, w_dense, b_dense)
    out = jax.block_until_ready(out)

    ref = reference_forward(x, w_ih, w_hh, b_ih, b_hh, w_dense, b_dense)
    assert out.shape == (N, K)
    assert jnp.allclose(out, ref, atol=1e-5, rtol=1e-5), (out, ref)

    print("KERNEL_OK")
</pallas_src>

<mosaic_0001>
module attributes {stable_mosaic.version = 11 : i64} {
  func.func @rnn_dense_kernel(%arg0: memref<16x4xf32, #tpu.memory_space<vmem>>, %arg1: memref<4x32xf32, #tpu.memory_space<vmem>>, %arg2: memref<32x32xf32, #tpu.memory_space<vmem>>, %arg3: memref<1x32xf32, #tpu.memory_space<vmem>>, %arg4: memref<32x128xf32, #tpu.memory_space<vmem>>, %arg5: memref<1x128xf32, #tpu.memory_space<vmem>>, %arg6: memref<2x128xf32, #tpu.memory_space<vmem>>) attributes {dimension_semantics = [], scalar_prefetch = 0 : i64, scratch_operands = 0 : i64, tpu.core_type = #tpu.core_type<tc>} {
    %c0 = arith.constant 0 : index
    %c0_0 = arith.constant 0 : index
    %0 = vector.load %arg0[%c0, %c0_0] : memref<16x4xf32, #tpu.memory_space<vmem>>, vector<16x4xf32>
    %c0_1 = arith.constant 0 : index
    %c0_2 = arith.constant 0 : index
    %1 = vector.load %arg1[%c0_1, %c0_2] : memref<4x32xf32, #tpu.memory_space<vmem>>, vector<4x32xf32>
    %cst = arith.constant dense<0.000000e+00> : vector<16x32xf32>
    %2 = tpu.matmul %0, %1, %cst {dimension_numbers = #tpu.dot_dimension_numbers<[1], [0], [0], [1], [0, 0, 1, 1], [], []>} : vector<16x4xf32>, vector<4x32xf32>, vector<16x32xf32> -> vector<16x32xf32>
    %c0_3 = arith.constant 0 : index
    %c0_4 = arith.constant 0 : index
    %3 = vector.load %arg3[%c0_3, %c0_4] : memref<1x32xf32, #tpu.memory_space<vmem>>, vector<1x32xf32>
    %4 = vector.broadcast %3 : vector<1x32xf32> to vector<16x32xf32>
    %5 = arith.addf %2, %4 : vector<16x32xf32>
    %c0_5 = arith.constant 0 : index
    %c0_6 = arith.constant 0 : index
    %6 = vector.load %arg2[%c0_5, %c0_6] : memref<32x32xf32, #tpu.memory_space<vmem>>, vector<32x32xf32>
    %cst_7 = arith.constant 0.000000e+00 : f32
    %7 = vector.broadcast %cst_7 : f32 to vector<2x32xf32>
    %8 = vector.extract_strided_slice %5 {offsets = [0, 0], sizes = [2, 32], strides = [1, 1]} : vector<16x32xf32> to vector<2x32xf32>
    %cst_8 = arith.constant dense<0.000000e+00> : vector<2x32xf32>
    %9 = tpu.matmul %7, %6, %cst_8 {dimension_numbers = #tpu.dot_dimension_numbers<[1], [0], [0], [1], [0, 0, 1, 1], [], []>} : vector<2x32xf32>, vector<32x32xf32>, vector<2x32xf32> -> vector<2x32xf32>
    %10 = arith.addf %8, %9 : vector<2x32xf32>
    %cst_9 = arith.constant 0.000000e+00 : f32
    %11 = vector.broadcast %cst_9 : f32 to vector<2x32xf32>
    %12 = arith.maximumf %10, %11 : vector<2x32xf32>
    %13 = vector.extract_strided_slice %5 {offsets = [2, 0], sizes = [2, 32], strides = [1, 1]} : vector<16x32xf32> to vector<2x32xf32>
    %cst_10 = arith.constant dense<0.000000e+00> : vector<2x32xf32>
    %14 = tpu.matmul %12, %6, %cst_10 {dimension_numbers = #tpu.dot_dimension_numbers<[1], [0], [0], [1], [0, 0, 1, 1], [], []>} : vector<2x32xf32>, vector<32x32xf32>, vector<2x32xf32> -> vector<2x32xf32>
    %15 = arith.addf %13, %14 : vector<2x32xf32>
    %cst_11 = arith.constant 0.000000e+00 : f32
    %16 = vector.broadcast %cst_11 : f32 to vector<2x32xf32>
    %17 = arith.maximumf %15, %16 : vector<2x32xf32>
    %18 = vector.extract_strided_slice %5 {offsets = [4, 0], sizes = [2, 32], strides = [1, 1]} : vector<16x32xf32> to vector<2x32xf32>
    %cst_12 = arith.constant dense<0.000000e+00> : vector<2x32xf32>
    %19 = tpu.matmul %17, %6, %cst_12 {dimension_numbers = #tpu.dot_dimension_numbers<[1], [0], [0], [1], [0, 0, 1, 1], [], []>} : vector<2x32xf32>, vector<32x32xf32>, vector<2x32xf32> -> vector<2x32xf32>
    %20 = arith.addf %18, %19 : vector<2x32xf32>
    %cst_13 = arith.constant 0.000000e+00 : f32
    %21 = vector.broadcast %cst_13 : f32 to vector<2x32xf32>
    %22 = arith.maximumf %20, %21 : vector<2x32xf32>
    %23 = vector.extract_strided_slice %5 {offsets = [6, 0], sizes = [2, 32], strides = [1, 1]} : vector<16x32xf32> to vector<2x32xf32>
    %cst_14 = arith.constant dense<0.000000e+00> : vector<2x32xf32>
    %24 = tpu.matmul %22, %6, %cst_14 {dimension_numbers = #tpu.dot_dimension_numbers<[1], [0], [0], [1], [0, 0, 1, 1], [], []>} : vector<2x32xf32>, vector<32x32xf32>, vector<2x32xf32> -> vector<2x32xf32>
    %25 = arith.addf %23, %24 : vector<2x32xf32>
    %cst_15 = arith.constant 0.000000e+00 : f32
    %26 = vector.broadcast %cst_15 : f32 to vector<2x32xf32>
    %27 = arith.maximumf %25, %26 : vector<2x32xf32>
    %28 = vector.extract_strided_slice %5 {offsets = [8, 0], sizes = [2, 32], strides = [1, 1]} : vector<16x32xf32> to vector<2x32xf32>
    %cst_16 = arith.constant dense<0.000000e+00> : vector<2x32xf32>
    %29 = tpu.matmul %27, %6, %cst_16 {dimension_numbers = #tpu.dot_dimension_numbers<[1], [0], [0], [1], [0, 0, 1, 1], [], []>} : vector<2x32xf32>, vector<32x32xf32>, vector<2x32xf32> -> vector<2x32xf32>
    %30 = arith.addf %28, %29 : vector<2x32xf32>
    %cst_17 = arith.constant 0.000000e+00 : f32
    %31 = vector.broadcast %cst_17 : f32 to vector<2x32xf32>
    %32 = arith.maximumf %30, %31 : vector<2x32xf32>
    %33 = vector.extract_strided_slice %5 {offsets = [10, 0], sizes = [2, 32], strides = [1, 1]} : vector<16x32xf32> to vector<2x32xf32>
    %cst_18 = arith.constant dense<0.000000e+00> : vector<2x32xf32>
    %34 = tpu.matmul %32, %6, %cst_18 {dimension_numbers = #tpu.dot_dimension_numbers<[1], [0], [0], [1], [0, 0, 1, 1], [], []>} : vector<2x32xf32>, vector<32x32xf32>, vector<2x32xf32> -> vector<2x32xf32>
    %35 = arith.addf %33, %34 : vector<2x32xf32>
    %cst_19 = arith.constant 0.000000e+00 : f32
    %36 = vector.broadcast %cst_19 : f32 to vector<2x32xf32>
    %37 = arith.maximumf %35, %36 : vector<2x32xf32>
    %38 = vector.extract_strided_slice %5 {offsets = [12, 0], sizes = [2, 32], strides = [1, 1]} : vector<16x32xf32> to vector<2x32xf32>
    %cst_20 = arith.constant dense<0.000000e+00> : vector<2x32xf32>
    %39 = tpu.matmul %37, %6, %cst_20 {dimension_numbers = #tpu.dot_dimension_numbers<[1], [0], [0], [1], [0, 0, 1, 1], [], []>} : vector<2x32xf32>, vector<32x32xf32>, vector<2x32xf32> -> vector<2x32xf32>
    %40 = arith.addf %38, %39 : vector<2x32xf32>
    %cst_21 = arith.constant 0.000000e+00 : f32
    %41 = vector.broadcast %cst_21 : f32 to vector<2x32xf32>
    %42 = arith.maximumf %40, %41 : vector<2x32xf32>
    %43 = vector.extract_strided_slice %5 {offsets = [14, 0], sizes = [2, 32], strides = [1, 1]} : vector<16x32xf32> to vector<2x32xf32>
    %cst_22 = arith.constant dense<0.000000e+00> : vector<2x32xf32>
    %44 = tpu.matmul %42, %6, %cst_22 {dimension_numbers = #tpu.dot_dimension_numbers<[1], [0], [0], [1], [0, 0, 1, 1], [], []>} : vector<2x32xf32>, vector<32x32xf32>, vector<2x32xf32> -> vector<2x32xf32>
    %45 = arith.addf %43, %44 : vector<2x32xf32>
    %cst_23 = arith.constant 0.000000e+00 : f32
    %46 = vector.broadcast %cst_23 : f32 to vector<2x32xf32>
    %47 = arith.maximumf %45, %46 : vector<2x32xf32>
    %c0_24 = arith.constant 0 : index
    %c0_25 = arith.constant 0 : index
    %48 = vector.load %arg4[%c0_24, %c0_25] : memref<32x128xf32, #tpu.memory_space<vmem>>, vector<32x128xf32>
    %cst_26 = arith.constant dense<0.000000e+00> : vector<2x128xf32>
    %49 = tpu.matmul %47, %48, %cst_26 {dimension_numbers = #tpu.dot_dimension_numbers<[1], [0], [0], [1], [0, 0, 1, 1], [], []>} : vector<2x32xf32>, vector<32x128xf32>, vector<2x128xf32> -> vector<2x128xf32>
    %c0_27 = arith.constant 0 : index
    %c0_28 = arith.constant 0 : index
    %50 = vector.load %arg5[%c0_27, %c0_28] : memref<1x128xf32, #tpu.memory_space<vmem>>, vector<1x128xf32>
    %51 = vector.broadcast %50 : vector<1x128xf32> to vector<2x128xf32>
    %52 = arith.addf %49, %51 : vector<2x128xf32>
    %c0_29 = arith.constant 0 : index
    %c0_30 = arith.constant 0 : index
    %53 = vector.load %arg6[%c0_29, %c0_30] : memref<2x128xf32, #tpu.memory_space<vmem>>, vector<2x128xf32>
    tpu.vector_store %arg6[%c0_29, %c0_30], %52 {strides = array<i32>} : memref<2x128xf32, #tpu.memory_space<vmem>>, vector<2x128xf32>,
    return
  }
}

</mosaic_0001>

<llo_original>
// kernel: tpu_custom_call.1
$region0: #{tpu_custom_call.1}
  #allocation0 [shape = 'u32[]', space=smem, size = 0x4, offset = 0x4, fixed_abs, tag = 'smem constant byte address 0x4 - core index']
  #allocation1 [shape = 'u32[144,128]{1,0:T(1,128)}', space=vmem, size = 0x12000, scoped, tag = 'internal scratch']
  %s0 = inlined_call_operand.vmem [shape: f32[16,4], index: 0, kind: input, shape index: {}]
  %s1 = inlined_call_operand.vmem [shape: f32[4,32], index: 1, kind: input, shape index: {}]
  %s2 = inlined_call_operand.hbm [shape: f32[32,32], index: 2, kind: input, shape index: {}]
  %s3 = inlined_call_operand.vmem [shape: f32[1,32], index: 3, kind: input, shape index: {}]
  %s4 = inlined_call_operand.hbm [shape: f32[32,128], index: 4, kind: input, shape index: {}]
  %s5 = inlined_call_operand.vmem [shape: f32[1,128], index: 5, kind: input, shape index: {}]
  %s6 = inlined_call_operand.hbm [shape: f32[2,128], index: 6, kind: output, shape index: {}]
  %s7 = sld [smem:[#allocation0]]
  $region42: #{tpu_custom_call.1} parent=0
    _
  %s9 = ssub.s32 1, %s7
  %s10 = scalar_select 0, %s9, %s7
  $region1: #{tpu_custom_call.1} parent=0
    #allocation2 [shape = 'u8[16384]{0}', space=vmem, size = 0x4000, scoped, tag = 'input window, operand 2, single buffered']
    #allocation3 [shape = 's32[1]{0}', space=sflag, size = 0x4, scoped, tag = 'scoped memory for tpu_custom_call.1']
    #allocation4 [shape = 's32[1]{0}', space=sflag, size = 0x4, scoped, tag = 'scoped memory for tpu_custom_call.1']
    #allocation5 [shape = 'u8[16384]{0}', space=vmem, size = 0x4000, scoped, tag = 'input window, operand 4, single buffered']
    #allocation6 [shape = 's32[1]{0}', space=sflag, size = 0x4, scoped, tag = 'scoped memory for tpu_custom_call.1']
    #allocation7 [shape = 'u8[1024]{0}', space=vmem, size = 0x400, scoped, tag = 'output window, operand 0, single buffered']
    %11 = vsyncpa [#allocation3], 0
    %12 = vsyncpa [#allocation6], 0
    %13 = vsyncpa [#allocation4], 0
    // Predicated region
    $region2: #{tpu_custom_call.1} parent=1 // pred_check
      _
    $region3: #{tpu_custom_call.1} parent=1 // pred_check_branch
      %15 = sbr.rel (0) target = $region5
    $region4: #{tpu_custom_call.1} parent=1 // pred_region
      _
    $region5: #{tpu_custom_call.1} parent=1 // pred_fallthru
      _
    // Predicated region
    $region6: #{tpu_custom_call.1} parent=1 // pred_check
      _
    $region7: #{tpu_custom_call.1} parent=1 // pred_check_branch
      %17 = sbr.rel (0) target = $region9
    $region8: #{tpu_custom_call.1} parent=1 // pred_region
      _
    $region9: #{tpu_custom_call.1} parent=1 // pred_fallthru
      _
    // Predicated region
    $region10: #{tpu_custom_call.1} parent=1 // pred_check
      _
    $region11: #{tpu_custom_call.1} parent=1 // pred_check_branch
      %19 = sbr.rel (0) target = $region13
    $region12: #{tpu_custom_call.1} parent=1 // pred_region
      %s21 = ssub.s32 512, 512
      %22 = vsyncadd [#allocation3], %s21
      %s23 = sshll.u32 [#allocation2], 4
      %s24 = int_to_ptr.vmem [resolvable:$true] %s23
      %29 = dma.hbm_to_vmem [thread:$0]  %s2, 512, %s24, [#allocation3], 128, 128, 8
    $region13: #{tpu_custom_call.1} parent=1 // pred_fallthru
      _
    // Predicated region
    $region14: #{tpu_custom_call.1} parent=1 // pred_check
      _
    $region15: #{tpu_custom_call.1} parent=1 // pred_check_branch
      %31 = sbr.rel (0) target = $region17
    $region16: #{tpu_custom_call.1} parent=1 // pred_region
      _
    $region17: #{tpu_custom_call.1} parent=1 // pred_fallthru
      _
    // Predicated region
    $region18: #{tpu_custom_call.1} parent=1 // pred_check
      _
    $region19: #{tpu_custom_call.1} parent=1 // pred_check_branch
      %33 = sbr.rel (0) target = $region21
    $region20: #{tpu_custom_call.1} parent=1 // pred_region
      %s35 = ssub.s32 512, 512
      %36 = vsyncadd [#allocation6], %s35
      %s37 = sshll.u32 [#allocation5], 4
      %s38 = int_to_ptr.vmem [resolvable:$true] %s37
      %43 = dma.hbm_to_vmem [thread:$0]  %s4, 512, %s38, [#allocation6], 128, 128, 8
    $region21: #{tpu_custom_call.1} parent=1 // pred_fallthru
      _
    // Predicated region
    $region22: #{tpu_custom_call.1} parent=1 // pred_check
      _
    $region23: #{tpu_custom_call.1} parent=1 // pred_check_branch
      %45 = sbr.rel (0) target = $region25
    $region24: #{tpu_custom_call.1} parent=1 // pred_region
      _
    $region25: #{tpu_custom_call.1} parent=1 // pred_fallthru
      _
    // Predicated region
    $region26: #{tpu_custom_call.1} parent=1 // pred_check
      _
    $region27: #{tpu_custom_call.1} parent=1 // pred_check_branch
      %47 = sbr.rel (0) target = $region29
    $region28: #{tpu_custom_call.1} parent=1 // pred_region
      %48 = dma.done [#allocation3], 512
    $region29: #{tpu_custom_call.1} parent=1 // pred_fallthru
      _
    // Predicated region
    $region30: #{tpu_custom_call.1} parent=1 // pred_check
      _
    $region31: #{tpu_custom_call.1} parent=1 // pred_check_branch
      %50 = sbr.rel (0) target = $region33
    $region32: #{tpu_custom_call.1} parent=1 // pred_region
      %51 = dma.done [#allocation6], 512
    $region33: #{tpu_custom_call.1} parent=1 // pred_fallthru
      _
    %v52 = vld [vmem:[%s0] sm:$0xff]
    %v53 = vld [vmem:[%s0 + $0x8] sm:$0xff]
    %v54 = vld [vmem:[%s1] sm:$0xf]
    %v55 = vld [vmem:[%s3] sm:$0x1]
    %v57 = vlaneseq
    %v58 = vshrl.u32 %v57, 7
    %v59 = vsub.s32 0, %v58
    %v60 = vrot.slane %v55, %v59
    %vm62 = vcmask 31744
    %v64 = vsel %vm62, %v52, 0
    %v67 = vsel %vm62, %v53, 0
    %vm69 = vcmask 1043456
    %v71 = vsel %vm69, %v54, 0
    %73 = vmatprep.subr.mxu0 0.0
    %74 = vmatpush1.msra.mxu0 0.0
    %75 = vmatprep.subr.mxu0 0.0
    %76 = vmatpush1.msra.mxu0 0.0
    %77 = vmatprep.subr.mxu0 0.0
    %78 = vmatpush1.msra.mxu0 0.0
    %79 = vmatprep.subr.mxu0 0.0
    %80 = vmatpush1.msra.mxu0 0.0
    %81 = vmatprep.subr.mxu0 0.0
    %82 = vmatpush1.msra.mxu0 0.0
    %83 = vmatprep.subr.mxu0 0.0
    %84 = vmatpush1.msra.mxu0 0.0
    %85 = vmatprep.subr.mxu0 0.0
    %86 = vmatpush1.msra.mxu0 0.0
    %87 = vmatprep.subr.mxu0 0.0
    %88 = vmatpush1.msra.mxu0 0.0
    %89 = vmatprep.subr.mxu0 0.0
    %90 = vmatpush1.msra.mxu0 0.0
    %91 = vmatprep.subr.mxu0 0.0
    %92 = vmatpush1.msra.mxu0 0.0
    %93 = vmatprep.subr.mxu0 0.0
    %94 = vmatpush1.msra.mxu0 0.0
    %95 = vmatprep.subr.mxu0 0.0
    %96 = vmatpush1.msra.mxu0 0.0
    %97 = vmatprep.subr.mxu0 0.0
    %98 = vmatpush1.msra.mxu0 0.0
    %99 = vmatprep.subr.mxu0 0.0
    %100 = vmatpush1.msra.mxu0 0.0
    %101 = vmatprep.subr.mxu0 0.0
    %102 = vmatpush1.msra.mxu0 0.0
    %103 = vmatprep.subr.mxu0 0.0
    %104 = vmatpush1.msra.mxu0 %v71
    %105 = vmatprep.subr.mxu0 0.0
    %106 = vmatpush2.msra.mxu0 0.0
    %107 = vmatprep.subr.mxu0 0.0
    %108 = vmatpush2.msra.mxu0 0.0
    %109 = vmatprep.subr.mxu0 0.0
    %110 = vmatpush2.msra.mxu0 0.0
    %111 = vmatprep.subr.mxu0 0.0
    %112 = vmatpush2.msra.mxu0 0.0
    %113 = vmatprep.subr.mxu0 0.0
    %114 = vmatpush2.msra.mxu0 0.0
    %115 = vmatprep.subr.mxu0 0.0
    %116 = vmatpush2.msra.mxu0 0.0
    %117 = vmatprep.subr.mxu0 0.0
    %118 = vmatpush2.msra.mxu0 0.0
    %119 = vmatprep.subr.mxu0 0.0
    %120 = vmatpush2.msra.mxu0 0.0
    %121 = vmatprep.subr.mxu0 0.0
    %122 = vmatpush2.msra.mxu0 0.0
    %123 = vmatprep.subr.mxu0 0.0
    %124 = vmatpush2.msra.mxu0 0.0
    %125 = vmatprep.subr.mxu0 0.0
    %126 = vmatpush2.msra.mxu0 0.0
    %127 = vmatprep.subr.mxu0 0.0
    %128 = vmatpush2.msra.mxu0 0.0
    %129 = vmatprep.subr.mxu0 0.0
    %130 = vmatpush2.msra.mxu0 0.0
    %131 = vmatprep.subr.mxu0 0.0
    %132 = vmatpush2.msra.mxu0 0.0
    %133 = vmatprep.subr.mxu0 0.0
    %134 = vmatpush2.msra.mxu0 0.0
    %135 = vmatprep.subr.mxu0 0.0
    %136 = vmatpush2.msra.mxu0 0.0
    %137 = vmatprep.mubr.f32.mxu0 0.0
    %138 = vmatmul.mubr.f32.gmra.mxu0 %v64
    %v139 = vpop.f32.mrf.mxu0
    %v140 = vadd.f32 %v60, %v139
    %v141 = vpop.f32.mrf.mxu0
    %142 = vmatprep.mubr.f32.mxu0 0.0
    %143 = vmatmul.mubr.f32.gmra.mxu0 %v67
    %v144 = vpop.f32.mrf.mxu0
    %v145 = vadd.f32 %v60, %v144
    %v146 = vpop.f32.mrf.mxu0
    %147 = vdwg.mxu0
    %v148 = vld [vmem:[#allocation2] sm:$0xff]
    %v149 = vld [vmem:[#allocation2 + $0x8] sm:$0xff]
    %v150 = vld [vmem:[#allocation2 + $0x10] sm:$0xff]
    %v151 = vld [vmem:[#allocation2 + $0x18] sm:$0xff]
    %vm152 = vcmask 261120
    %v154 = vsel %vm152, 0.0, 0
    %156 = vmatprep.subr.mxu0 0.0
    %157 = vmatpush1.msra.mxu0 0.0
    %158 = vmatprep.subr.mxu0 0.0
    %159 = vmatpush1.msra.mxu0 0.0
    %160 = vmatprep.subr.mxu0 0.0
    %161 = vmatpush1.msra.mxu0 0.0
    %162 = vmatprep.subr.mxu0 0.0
    %163 = vmatpush1.msra.mxu0 0.0
    %164 = vmatprep.subr.mxu0 0.0
    %165 = vmatpush1.msra.mxu0 0.0
    %166 = vmatprep.subr.mxu0 0.0
    %167 = vmatpush1.msra.mxu0 0.0
    %168 = vmatprep.subr.mxu0 0.0
    %169 = vmatpush1.msra.mxu0 0.0
    %170 = vmatprep.subr.mxu0 0.0
    %171 = vmatpush1.msra.mxu0 0.0
    %172 = vmatprep.subr.mxu0 0.0
    %173 = vmatpush1.msra.mxu0 0.0
    %174 = vmatprep.subr.mxu0 0.0
    %175 = vmatpush1.msra.mxu0 0.0
    %176 = vmatprep.subr.mxu0 0.0
    %177 = vmatpush1.msra.mxu0 0.0
    %178 = vmatprep.subr.mxu0 0.0
    %179 = vmatpush1.msra.mxu0 0.0
    %180 = vmatprep.subr.mxu0 0.0
    %181 = vmatpush1.msra.mxu0 %v151
    %182 = vmatprep.subr.mxu0 0.0
    %183 = vmatpush1.msra.mxu0 %v150
    %184 = vmatprep.subr.mxu0 0.0
    %185 = vmatpush1.msra.mxu0 %v149
    %186 = vmatprep.subr.mxu0 0.0
    %187 = vmatpush1.msra.mxu0 %v148
    %188 = vmatprep.subr.mxu0 0.0
    %189 = vmatpush2.msra.mxu0 0.0
    %190 = vmatprep.subr.mxu0 0.0
    %191 = vmatpush2.msra.mxu0 0.0
    %192 = vmatprep.subr.mxu0 0.0
    %193 = vmatpush2.msra.mxu0 0.0
    %194 = vmatprep.subr.mxu0 0.0
    %195 = vmatpush2.msra.mxu0 0.0
    %196 = vmatprep.subr.mxu0 0.0
    %197 = vmatpush2.msra.mxu0 0.0
    %198 = vmatprep.subr.mxu0 0.0
    %199 = vmatpush2.msra.mxu0 0.0
    %200 = vmatprep.subr.mxu0 0.0
    %201 = vmatpush2.msra.mxu0 0.0
    %202 = vmatprep.subr.mxu0 0.0
    %203 = vmatpush2.msra.mxu0 0.0
    %204 = vmatprep.subr.mxu0 0.0
    %205 = vmatpush2.msra.mxu0 0.0
    %206 = vmatprep.subr.mxu0 0.0
    %207 = vmatpush2.msra.mxu0 0.0
    %208 = vmatprep.subr.mxu0 0.0
    %209 = vmatpush2.msra.mxu0 0.0
    %210 = vmatprep.subr.mxu0 0.0
    %211 = vmatpush2.msra.mxu0 0.0
    %212 = vmatprep.subr.mxu0 0.0
    %213 = vmatpush2.msra.mxu0 0.0
    %214 = vmatprep.subr.mxu0 0.0
    %215 = vmatpush2.msra.mxu0 0.0
    %216 = vmatprep.subr.mxu0 0.0
    %217 = vmatpush2.msra.mxu0 0.0
    %218 = vmatprep.subr.mxu0 0.0
    %219 = vmatpush2.msra.mxu0 0.0
    %220 = vmatprep.mubr.f32.mxu0 0.0
    %221 = vmatmul.mubr.f32.gmra.mxu0 %v154
    %v222 = vpop.f32.mrf.mxu0
    %v223 = vadd.f32 0.0, %v222
    %v224 = vpop.f32.mrf.mxu0
    %225 = vdwg.mxu0
    %v226 = vadd.f32 %v140, %v223
    %v227 = vmax.f32 %v226, 0.0
    %v229 = vsel %vm152, %v227, 0
    %231 = vmatprep.subr.mxu0 0.0
    %232 = vmatpush1.msra.mxu0 0.0
    %233 = vmatprep.subr.mxu0 0.0
    %234 = vmatpush1.msra.mxu0 0.0
    %235 = vmatprep.subr.mxu0 0.0
    %236 = vmatpush1.msra.mxu0 0.0
    %237 = vmatprep.subr.mxu0 0.0
    %238 = vmatpush1.msra.mxu0 0.0
    %239 = vmatprep.subr.mxu0 0.0
    %240 = vmatpush1.msra.mxu0 0.0
    %241 = vmatprep.subr.mxu0 0.0
    %242 = vmatpush1.msra.mxu0 0.0
    %243 = vmatprep.subr.mxu0 0.0
    %244 = vmatpush1.msra.mxu0 0.0
    %245 = vmatprep.subr.mxu0 0.0
    %246 = vmatpush1.msra.mxu0 0.0
    %247 = vmatprep.subr.mxu0 0.0
    %248 = vmatpush1.msra.mxu0 0.0
    %249 = vmatprep.subr.mxu0 0.0
    %250 = vmatpush1.msra.mxu0 0.0
    %251 = vmatprep.subr.mxu0 0.0
    %252 = vmatpush1.msra.mxu0 0.0
    %253 = vmatprep.subr.mxu0 0.0
    %254 = vmatpush1.msra.mxu0 0.0
    %255 = vmatprep.subr.mxu0 0.0
    %256 = vmatpush1.msra.mxu0 %v151
    %257 = vmatprep.subr.mxu0 0.0
    %258 = vmatpush1.msra.mxu0 %v150
    %259 = vmatprep.subr.mxu0 0.0
    %260 = vmatpush1.msra.mxu0 %v149
    %261 = vmatprep.subr.mxu0 0.0
    %262 = vmatpush1.msra.mxu0 %v148
    %263 = vmatprep.subr.mxu0 0.0
    %264 = vmatpush2.msra.mxu0 0.0
    %265 = vmatprep.subr.mxu0 0.0
    %266 = vmatpush2.msra.mxu0 0.0
    %267 = vmatprep.subr.mxu0 0.0
    %268 = vmatpush2.msra.mxu0 0.0
    %269 = vmatprep.subr.mxu0 0.0
    %270 = vmatpush2.msra.mxu0 0.0
    %271 = vmatprep.subr.mxu0 0.0
    %272 = vmatpush2.msra.mxu0 0.0
    %273 = vmatprep.subr.mxu0 0.0
    %274 = vmatpush2.msra.mxu0 0.0
    %275 = vmatprep.subr.mxu0 0.0
    %276 = vmatpush2.msra.mxu0 0.0
    %277 = vmatprep.subr.mxu0 0.0
    %278 = vmatpush2.msra.mxu0 0.0
    %279 = vmatprep.subr.mxu0 0.0
    %280 = vmatpush2.msra.mxu0 0.0
    %281 = vmatprep.subr.mxu0 0.0
    %282 = vmatpush2.msra.mxu0 0.0
    %283 = vmatprep.subr.mxu0 0.0
    %284 = vmatpush2.msra.mxu0 0.0
    %285 = vmatprep.subr.mxu0 0.0
    %286 = vmatpush2.msra.mxu0 0.0
    %287 = vmatprep.subr.mxu0 0.0
    %288 = vmatpush2.msra.mxu0 0.0
    %289 = vmatprep.subr.mxu0 0.0
    %290 = vmatpush2.msra.mxu0 0.0
    %291 = vmatprep.subr.mxu0 0.0
    %292 = vmatpush2.msra.mxu0 0.0
    %293 = vmatprep.subr.mxu0 0.0
    %294 = vmatpush2.msra.mxu0 0.0
    %295 = vmatprep.mubr.f32.mxu0 0.0
    %296 = vmatmul.mubr.f32.gmra.mxu0 %v229
    %v297 = vpop.f32.mrf.mxu0
    %v298 = vadd.f32 0.0, %v297
    %v299 = vpop.f32.mrf.mxu0
    %300 = vdwg.mxu0
    %v302 = vrot.slane %v298, 6
    %v304 = vadd.f32 %v140, %v302
    %v305 = vmax.f32 %v304, 0.0
    %v307 = vrot.slane %v305, 2
    %v308 = vsel %vm152, %v307, 0
    %310 = vmatprep.subr.mxu0 0.0
    %311 = vmatpush1.msra.mxu0 0.0
    %312 = vmatprep.subr.mxu0 0.0
    %313 = vmatpush1.msra.mxu0 0.0
    %314 = vmatprep.subr.mxu0 0.0
    %315 = vmatpush1.msra.mxu0 0.0
    %316 = vmatprep.subr.mxu0 0.0
    %317 = vmatpush1.msra.mxu0 0.0
    %318 = vmatprep.subr.mxu0 0.0
    %319 = vmatpush1.msra.mxu0 0.0
    %320 = vmatprep.subr.mxu0 0.0
    %321 = vmatpush1.msra.mxu0 0.0
    %322 = vmatprep.subr.mxu0 0.0
    %323 = vmatpush1.msra.mxu0 0.0
    %324 = vmatprep.subr.mxu0 0.0
    %325 = vmatpush1.msra.mxu0 0.0
    %326 = vmatprep.subr.mxu0 0.0
    %327 = vmatpush1.msra.mxu0 0.0
    %328 = vmatprep.subr.mxu0 0.0
    %329 = vmatpush1.msra.mxu0 0.0
    %330 = vmatprep.subr.mxu0 0.0
    %331 = vmatpush1.msra.mxu0 0.0
    %332 = vmatprep.subr.mxu0 0.0
    %333 = vmatpush1.msra.mxu0 0.0
    %334 = vmatprep.subr.mxu0 0.0
    %335 = vmatpush1.msra.mxu0 %v151
    %336 = vmatprep.subr.mxu0 0.0
    %337 = vmatpush1.msra.mxu0 %v150
    %338 = vmatprep.subr.mxu0 0.0
    %339 = vmatpush1.msra.mxu0 %v149
    %340 = vmatprep.subr.mxu0 0.0
    %341 = vmatpush1.msra.mxu0 %v148
    %342 = vmatprep.subr.mxu0 0.0
    %343 = vmatpush2.msra.mxu0 0.0
    %344 = vmatprep.subr.mxu0 0.0
    %345 = vmatpush2.msra.mxu0 0.0
    %346 = vmatprep.subr.mxu0 0.0
    %347 = vmatpush2.msra.mxu0 0.0
    %348 = vmatprep.subr.mxu0 0.0
    %349 = vmatpush2.msra.mxu0 0.0
    %350 = vmatprep.subr.mxu0 0.0
    %351 = vmatpush2.msra.mxu0 0.0
    %352 = vmatprep.subr.mxu0 0.0
    %353 = vmatpush2.msra.mxu0 0.0
    %354 = vmatprep.subr.mxu0 0.0
    %355 = vmatpush2.msra.mxu0 0.0
    %356 = vmatprep.subr.mxu0 0.0
    %357 = vmatpush2.msra.mxu0 0.0
    %358 = vmatprep.subr.mxu0 0.0
    %359 = vmatpush2.msra.mxu0 0.0
    %360 = vmatprep.subr.mxu0 0.0
    %361 = vmatpush2.msra.mxu0 0.0
    %362 = vmatprep.subr.mxu0 0.0
    %363 = vmatpush2.msra.mxu0 0.0
    %364 = vmatprep.subr.mxu0 0.0
    %365 = vmatpush2.msra.mxu0 0.0
    %366 = vmatprep.subr.mxu0 0.0
    %367 = vmatpush2.msra.mxu0 0.0
    %368 = vmatprep.subr.mxu0 0.0
    %369 = vmatpush2.msra.mxu0 0.0
    %370 = vmatprep.subr.mxu0 0.0
    %371 = vmatpush2.msra.mxu0 0.0
    %372 = vmatprep.subr.mxu0 0.0
    %373 = vmatpush2.msra.mxu0 0.0
    %374 = vmatprep.mubr.f32.mxu0 0.0
    %375 = vmatmul.mubr.f32.gmra.mxu0 %v308
    %v376 = vpop.f32.mrf.mxu0
    %v377 = vadd.f32 0.0, %v376
    %v378 = vpop.f32.mrf.mxu0
    %379 = vdwg.mxu0
    %v381 = vrot.slane %v377, 4
    %v383 = vadd.f32 %v140, %v381
    %v384 = vmax.f32 %v383, 0.0
    %v386 = vrot.slane %v384, 4
    %v387 = vsel %vm152, %v386, 0
    %389 = vmatprep.subr.mxu0 0.0
    %390 = vmatpush1.msra.mxu0 0.0
    %391 = vmatprep.subr.mxu0 0.0
    %392 = vmatpush1.msra.mxu0 0.0
    %393 = vmatprep.subr.mxu0 0.0
    %394 = vmatpush1.msra.mxu0 0.0
    %395 = vmatprep.subr.mxu0 0.0
    %396 = vmatpush1.msra.mxu0 0.0
    %397 = vmatprep.subr.mxu0 0.0
    %398 = vmatpush1.msra.mxu0 0.0
    %399 = vmatprep.subr.mxu0 0.0
    %400 = vmatpush1.msra.mxu0 0.0
    %401 = vmatprep.subr.mxu0 0.0
    %402 = vmatpush1.msra.mxu0 0.0
    %403 = vmatprep.subr.mxu0 0.0
    %404 = vmatpush1.msra.mxu0 0.0
    %405 = vmatprep.subr.mxu0 0.0
    %406 = vmatpush1.msra.mxu0 0.0
    %407 = vmatprep.subr.mxu0 0.0
    %408 = vmatpush1.msra.mxu0 0.0
    %409 = vmatprep.subr.mxu0 0.0
    %410 = vmatpush1.msra.mxu0 0.0
    %411 = vmatprep.subr.mxu0 0.0
    %412 = vmatpush1.msra.mxu0 0.0
    %413 = vmatprep.subr.mxu0 0.0
    %414 = vmatpush1.msra.mxu0 %v151
    %415 = vmatprep.subr.mxu0 0.0
    %416 = vmatpush1.msra.mxu0 %v150
    %417 = vmatprep.subr.mxu0 0.0
    %418 = vmatpush1.msra.mxu0 %v149
    %419 = vmatprep.subr.mxu0 0.0
    %420 = vmatpush1.msra.mxu0 %v148
    %421 = vmatprep.subr.mxu0 0.0
    %422 = vmatpush2.msra.mxu0 0.0
    %423 = vmatprep.subr.mxu0 0.0
    %424 = vmatpush2.msra.mxu0 0.0
    %425 = vmatprep.subr.mxu0 0.0
    %426 = vmatpush2.msra.mxu0 0.0
    %427 = vmatprep.subr.mxu0 0.0
    %428 = vmatpush2.msra.mxu0 0.0
    %429 = vmatprep.subr.mxu0 0.0
    %430 = vmatpush2.msra.mxu0 0.0
    %431 = vmatprep.subr.mxu0 0.0
    %432 = vmatpush2.msra.mxu0 0.0
    %433 = vmatprep.subr.mxu0 0.0
    %434 = vmatpush2.msra.mxu0 0.0
    %435 = vmatprep.subr.mxu0 0.0
    %436 = vmatpush2.msra.mxu0 0.0
    %437 = vmatprep.subr.mxu0 0.0
    %438 = vmatpush2.msra.mxu0 0.0
    %439 = vmatprep.subr.mxu0 0.0
    %440 = vmatpush2.msra.mxu0 0.0
    %441 = vmatprep.subr.mxu0 0.0
    %442 = vmatpush2.msra.mxu0 0.0
    %443 = vmatprep.subr.mxu0 0.0
    %444 = vmatpush2.msra.mxu0 0.0
    %445 = vmatprep.subr.mxu0 0.0
    %446 = vmatpush2.msra.mxu0 0.0
    %447 = vmatprep.subr.mxu0 0.0
    %448 = vmatpush2.msra.mxu0 0.0
    %449 = vmatprep.subr.mxu0 0.0
    %450 = vmatpush2.msra.mxu0 0.0
    %451 = vmatprep.subr.mxu0 0.0
    %452 = vmatpush2.msra.mxu0 0.0
    %453 = vmatprep.mubr.f32.mxu0 0.0
    %454 = vmatmul.mubr.f32.gmra.mxu0 %v387
    %v455 = vpop.f32.mrf.mxu0
    %v456 = vadd.f32 0.0, %v455
    %v457 = vpop.f32.mrf.mxu0
    %458 = vdwg.mxu0
    %v460 = vrot.slane %v456, 2
    %v462 = vadd.f32 %v140, %v460
    %v463 = vmax.f32 %v462, 0.0
    %v465 = vrot.slane %v463, 6
    %v466 = vsel %vm152, %v465, 0
    %468 = vmatprep.subr.mxu0 0.0
    %469 = vmatpush1.msra.mxu0 0.0
    %470 = vmatprep.subr.mxu0 0.0
    %471 = vmatpush1.msra.mxu0 0.0
    %472 = vmatprep.subr.mxu0 0.0
    %473 = vmatpush1.msra.mxu0 0.0
    %474 = vmatprep.subr.mxu0 0.0
    %475 = vmatpush1.msra.mxu0 0.0
    %476 = vmatprep.subr.mxu0 0.0
    %477 = vmatpush1.msra.mxu0 0.0
    %478 = vmatprep.subr.mxu0 0.0
    %479 = vmatpush1.msra.mxu0 0.0
    %480 = vmatprep.subr.mxu0 0.0
    %481 = vmatpush1.msra.mxu0 0.0
    %482 = vmatprep.subr.mxu0 0.0
    %483 = vmatpush1.msra.mxu0 0.0
    %484 = vmatprep.subr.mxu0 0.0
    %485 = vmatpush1.msra.mxu0 0.0
    %486 = vmatprep.subr.mxu0 0.0
    %487 = vmatpush1.msra.mxu0 0.0
    %488 = vmatprep.subr.mxu0 0.0
    %489 = vmatpush1.msra.mxu0 0.0
    %490 = vmatprep.subr.mxu0 0.0
    %491 = vmatpush1.msra.mxu0 0.0
    %492 = vmatprep.subr.mxu0 0.0
    %493 = vmatpush1.msra.mxu0 %v151
    %494 = vmatprep.subr.mxu0 0.0
    %495 = vmatpush1.msra.mxu0 %v150
    %496 = vmatprep.subr.mxu0 0.0
    %497 = vmatpush1.msra.mxu0 %v149
    %498 = vmatprep.subr.mxu0 0.0
    %499 = vmatpush1.msra.mxu0 %v148
    %500 = vmatprep.subr.mxu0 0.0
    %501 = vmatpush2.msra.mxu0 0.0
    %502 = vmatprep.subr.mxu0 0.0
    %503 = vmatpush2.msra.mxu0 0.0
    %504 = vmatprep.subr.mxu0 0.0
    %505 = vmatpush2.msra.mxu0 0.0
    %506 = vmatprep.subr.mxu0 0.0
    %507 = vmatpush2.msra.mxu0 0.0
    %508 = vmatprep.subr.mxu0 0.0
    %509 = vmatpush2.msra.mxu0 0.0
    %510 = vmatprep.subr.mxu0 0.0
    %511 = vmatpush2.msra.mxu0 0.0
    %512 = vmatprep.subr.mxu0 0.0
    %513 = vmatpush2.msra.mxu0 0.0
    %514 = vmatprep.subr.mxu0 0.0
    %515 = vmatpush2.msra.mxu0 0.0
    %516 = vmatprep.subr.mxu0 0.0
    %517 = vmatpush2.msra.mxu0 0.0
    %518 = vmatprep.subr.mxu0 0.0
    %519 = vmatpush2.msra.mxu0 0.0
    %520 = vmatprep.subr.mxu0 0.0
    %521 = vmatpush2.msra.mxu0 0.0
    %522 = vmatprep.subr.mxu0 0.0
    %523 = vmatpush2.msra.mxu0 0.0
    %524 = vmatprep.subr.mxu0 0.0
    %525 = vmatpush2.msra.mxu0 0.0
    %526 = vmatprep.subr.mxu0 0.0
    %527 = vmatpush2.msra.mxu0 0.0
    %528 = vmatprep.subr.mxu0 0.0
    %529 = vmatpush2.msra.mxu0 0.0
    %530 = vmatprep.subr.mxu0 0.0
    %531 = vmatpush2.msra.mxu0 0.0
    %532 = vmatprep.mubr.f32.mxu0 0.0
    %533 = vmatmul.mubr.f32.gmra.mxu0 %v466
    %v534 = vpop.f32.mrf.mxu0
    %v535 = vadd.f32 0.0, %v534
    %v536 = vpop.f32.mrf.mxu0
    %537 = vdwg.mxu0
    %v538 = vadd.f32 %v145, %v535
    %v539 = vmax.f32 %v538, 0.0
    %v541 = vsel %vm152, %v539, 0
    %543 = vmatprep.subr.mxu0 0.0
    %544 = vmatpush1.msra.mxu0 0.0
    %545 = vmatprep.subr.mxu0 0.0
    %546 = vmatpush1.msra.mxu0 0.0
    %547 = vmatprep.subr.mxu0 0.0
    %548 = vmatpush1.msra.mxu0 0.0
    %549 = vmatprep.subr.mxu0 0.0
    %550 = vmatpush1.msra.mxu0 0.0
    %551 = vmatprep.subr.mxu0 0.0
    %552 = vmatpush1.msra.mxu0 0.0
    %553 = vmatprep.subr.mxu0 0.0
    %554 = vmatpush1.msra.mxu0 0.0
    %555 = vmatprep.subr.mxu0 0.0
    %556 = vmatpush1.msra.mxu0 0.0
    %557 = vmatprep.subr.mxu0 0.0
    %558 = vmatpush1.msra.mxu0 0.0
    %559 = vmatprep.subr.mxu0 0.0
    %560 = vmatpush1.msra.mxu0 0.0
    %561 = vmatprep.subr.mxu0 0.0
    %562 = vmatpush1.msra.mxu0 0.0
    %563 = vmatprep.subr.mxu0 0.0
    %564 = vmatpush1.msra.mxu0 0.0
    %565 = vmatprep.subr.mxu0 0.0
    %566 = vmatpush1.msra.mxu0 0.0
    %567 = vmatprep.subr.mxu0 0.0
    %568 = vmatpush1.msra.mxu0 %v151
    %569 = vmatprep.subr.mxu0 0.0
    %570 = vmatpush1.msra.mxu0 %v150
    %571 = vmatprep.subr.mxu0 0.0
    %572 = vmatpush1.msra.mxu0 %v149
    %573 = vmatprep.subr.mxu0 0.0
    %574 = vmatpush1.msra.mxu0 %v148
    %575 = vmatprep.subr.mxu0 0.0
    %576 = vmatpush2.msra.mxu0 0.0
    %577 = vmatprep.subr.mxu0 0.0
    %578 = vmatpush2.msra.mxu0 0.0
    %579 = vmatprep.subr.mxu0 0.0
    %580 = vmatpush2.msra.mxu0 0.0
    %581 = vmatprep.subr.mxu0 0.0
    %582 = vmatpush2.msra.mxu0 0.0
    %583 = vmatprep.subr.mxu0 0.0
    %584 = vmatpush2.msra.mxu0 0.0
    %585 = vmatprep.subr.mxu0 0.0
    %586 = vmatpush2.msra.mxu0 0.0
    %587 = vmatprep.subr.mxu0 0.0
    %588 = vmatpush2.msra.mxu0 0.0
    %589 = vmatprep.subr.mxu0 0.0
    %590 = vmatpush2.msra.mxu0 0.0
    %591 = vmatprep.subr.mxu0 0.0
    %592 = vmatpush2.msra.mxu0 0.0
    %593 = vmatprep.subr.mxu0 0.0
    %594 = vmatpush2.msra.mxu0 0.0
    %595 = vmatprep.subr.mxu0 0.0
    %596 = vmatpush2.msra.mxu0 0.0
    %597 = vmatprep.subr.mxu0 0.0
    %598 = vmatpush2.msra.mxu0 0.0
    %599 = vmatprep.subr.mxu0 0.0
    %600 = vmatpush2.msra.mxu0 0.0
    %601 = vmatprep.subr.mxu0 0.0
    %602 = vmatpush2.msra.mxu0 0.0
    %603 = vmatprep.subr.mxu0 0.0
    %604 = vmatpush2.msra.mxu0 0.0
    %605 = vmatprep.subr.mxu0 0.0
    %606 = vmatpush2.msra.mxu0 0.0
    %607 = vmatprep.mubr.f32.mxu0 0.0
    %608 = vmatmul.mubr.f32.gmra.mxu0 %v541
    %v609 = vpop.f32.mrf.mxu0
    %v610 = vadd.f32 0.0, %v609
    %v611 = vpop.f32.mrf.mxu0
    %612 = vdwg.mxu0
    %v614 = vrot.slane %v610, 6
    %v616 = vadd.f32 %v145, %v614
    %v617 = vmax.f32 %v616, 0.0
    %v619 = vrot.slane %v617, 2
    %v620 = vsel %vm152, %v619, 0
    %622 = vmatprep.subr.mxu0 0.0
    %623 = vmatpush1.msra.mxu0 0.0
    %624 = vmatprep.subr.mxu0 0.0
    %625 = vmatpush1.msra.mxu0 0.0
    %626 = vmatprep.subr.mxu0 0.0
    %627 = vmatpush1.msra.mxu0 0.0
    %628 = vmatprep.subr.mxu0 0.0
    %629 = vmatpush1.msra.mxu0 0.0
    %630 = vmatprep.subr.mxu0 0.0
    %631 = vmatpush1.msra.mxu0 0.0
    %632 = vmatprep.subr.mxu0 0.0
    %633 = vmatpush1.msra.mxu0 0.0
    %634 = vmatprep.subr.mxu0 0.0
    %635 = vmatpush1.msra.mxu0 0.0
    %636 = vmatprep.subr.mxu0 0.0
    %637 = vmatpush1.msra.mxu0 0.0
    %638 = vmatprep.subr.mxu0 0.0
    %639 = vmatpush1.msra.mxu0 0.0
    %640 = vmatprep.subr.mxu0 0.0
    %641 = vmatpush1.msra.mxu0 0.0
    %642 = vmatprep.subr.mxu0 0.0
    %643 = vmatpush1.msra.mxu0 0.0
    %644 = vmatprep.subr.mxu0 0.0
    %645 = vmatpush1.msra.mxu0 0.0
    %646 = vmatprep.subr.mxu0 0.0
    %647 = vmatpush1.msra.mxu0 %v151
    %648 = vmatprep.subr.mxu0 0.0
    %649 = vmatpush1.msra.mxu0 %v150
    %650 = vmatprep.subr.mxu0 0.0
    %651 = vmatpush1.msra.mxu0 %v149
    %652 = vmatprep.subr.mxu0 0.0
    %653 = vmatpush1.msra.mxu0 %v148
    %654 = vmatprep.subr.mxu0 0.0
    %655 = vmatpush2.msra.mxu0 0.0
    %656 = vmatprep.subr.mxu0 0.0
    %657 = vmatpush2.msra.mxu0 0.0
    %658 = vmatprep.subr.mxu0 0.0
    %659 = vmatpush2.msra.mxu0 0.0
    %660 = vmatprep.subr.mxu0 0.0
    %661 = vmatpush2.msra.mxu0 0.0
    %662 = vmatprep.subr.mxu0 0.0
    %663 = vmatpush2.msra.mxu0 0.0
    %664 = vmatprep.subr.mxu0 0.0
    %665 = vmatpush2.msra.mxu0 0.0
    %666 = vmatprep.subr.mxu0 0.0
    %667 = vmatpush2.msra.mxu0 0.0
    %668 = vmatprep.subr.mxu0 0.0
    %669 = vmatpush2.msra.mxu0 0.0
    %670 = vmatprep.subr.mxu0 0.0
    %671 = vmatpush2.msra.mxu0 0.0
    %672 = vmatprep.subr.mxu0 0.0
    %673 = vmatpush2.msra.mxu0 0.0
    %674 = vmatprep.subr.mxu0 0.0
    %675 = vmatpush2.msra.mxu0 0.0
    %676 = vmatprep.subr.mxu0 0.0
    %677 = vmatpush2.msra.mxu0 0.0
    %678 = vmatprep.subr.mxu0 0.0
    %679 = vmatpush2.msra.mxu0 0.0
    %680 = vmatprep.subr.mxu0 0.0
    %681 = vmatpush2.msra.mxu0 0.0
    %682 = vmatprep.subr.mxu0 0.0
    %683 = vmatpush2.msra.mxu0 0.0
    %684 = vmatprep.subr.mxu0 0.0
    %685 = vmatpush2.msra.mxu0 0.0
    %686 = vmatprep.mubr.f32.mxu0 0.0
    %687 = vmatmul.mubr.f32.gmra.mxu0 %v620
    %v688 = vpop.f32.mrf.mxu0
    %v689 = vadd.f32 0.0, %v688
    %v690 = vpop.f32.mrf.mxu0
    %691 = vdwg.mxu0
    %v693 = vrot.slane %v689, 4
    %v695 = vadd.f32 %v145, %v693
    %v696 = vmax.f32 %v695, 0.0
    %v698 = vrot.slane %v696, 4
    %v699 = vsel %vm152, %v698, 0
    %701 = vmatprep.subr.mxu0 0.0
    %702 = vmatpush1.msra.mxu0 0.0
    %703 = vmatprep.subr.mxu0 0.0
    %704 = vmatpush1.msra.mxu0 0.0
    %705 = vmatprep.subr.mxu0 0.0
    %706 = vmatpush1.msra.mxu0 0.0
    %707 = vmatprep.subr.mxu0 0.0
    %708 = vmatpush1.msra.mxu0 0.0
    %709 = vmatprep.subr.mxu0 0.0
    %710 = vmatpush1.msra.mxu0 0.0
    %711 = vmatprep.subr.mxu0 0.0
    %712 = vmatpush1.msra.mxu0 0.0
    %713 = vmatprep.subr.mxu0 0.0
    %714 = vmatpush1.msra.mxu0 0.0
    %715 = vmatprep.subr.mxu0 0.0
    %716 = vmatpush1.msra.mxu0 0.0
    %717 = vmatprep.subr.mxu0 0.0
    %718 = vmatpush1.msra.mxu0 0.0
    %719 = vmatprep.subr.mxu0 0.0
    %720 = vmatpush1.msra.mxu0 0.0
    %721 = vmatprep.subr.mxu0 0.0
    %722 = vmatpush1.msra.mxu0 0.0
    %723 = vmatprep.subr.mxu0 0.0
    %724 = vmatpush1.msra.mxu0 0.0
    %725 = vmatprep.subr.mxu0 0.0
    %726 = vmatpush1.msra.mxu0 %v151
    %727 = vmatprep.subr.mxu0 0.0
    %728 = vmatpush1.msra.mxu0 %v150
    %729 = vmatprep.subr.mxu0 0.0
    %730 = vmatpush1.msra.mxu0 %v149
    %731 = vmatprep.subr.mxu0 0.0
    %732 = vmatpush1.msra.mxu0 %v148
    %733 = vmatprep.subr.mxu0 0.0
    %734 = vmatpush2.msra.mxu0 0.0
    %735 = vmatprep.subr.mxu0 0.0
    %736 = vmatpush2.msra.mxu0 0.0
    %737 = vmatprep.subr.mxu0 0.0
    %738 = vmatpush2.msra.mxu0 0.0
    %739 = vmatprep.subr.mxu0 0.0
    %740 = vmatpush2.msra.mxu0 0.0
    %741 = vmatprep.subr.mxu0 0.0
    %742 = vmatpush2.msra.mxu0 0.0
    %743 = vmatprep.subr.mxu0 0.0
    %744 = vmatpush2.msra.mxu0 0.0
    %745 = vmatprep.subr.mxu0 0.0
    %746 = vmatpush2.msra.mxu0 0.0
    %747 = vmatprep.subr.mxu0 0.0
    %748 = vmatpush2.msra.mxu0 0.0
    %749 = vmatprep.subr.mxu0 0.0
    %750 = vmatpush2.msra.mxu0 0.0
    %751 = vmatprep.subr.mxu0 0.0
    %752 = vmatpush2.msra.mxu0 0.0
    %753 = vmatprep.subr.mxu0 0.0
    %754 = vmatpush2.msra.mxu0 0.0
    %755 = vmatprep.subr.mxu0 0.0
    %756 = vmatpush2.msra.mxu0 0.0
    %757 = vmatprep.subr.mxu0 0.0
    %758 = vmatpush2.msra.mxu0 0.0
    %759 = vmatprep.subr.mxu0 0.0
    %760 = vmatpush2.msra.mxu0 0.0
    %761 = vmatprep.subr.mxu0 0.0
    %762 = vmatpush2.msra.mxu0 0.0
    %763 = vmatprep.subr.mxu0 0.0
    %764 = vmatpush2.msra.mxu0 0.0
    %765 = vmatprep.mubr.f32.mxu0 0.0
    %766 = vmatmul.mubr.f32.gmra.mxu0 %v699
    %v767 = vpop.f32.mrf.mxu0
    %v768 = vadd.f32 0.0, %v767
    %v769 = vpop.f32.mrf.mxu0
    %770 = vdwg.mxu0
    %v772 = vrot.slane %v768, 2
    %v774 = vadd.f32 %v145, %v772
    %v775 = vmax.f32 %v774, 0.0
    %v776 = vld [vmem:[#allocation5] sm:$0xff]
    %v777 = vld [vmem:[#allocation5 + $0x8] sm:$0xff]
    %v778 = vld [vmem:[#allocation5 + $0x10] sm:$0xff]
    %v779 = vld [vmem:[#allocation5 + $0x18] sm:$0xff]
    %v780 = vld [vmem:[%s5] sm:$0x1]
    %v782 = vlaneseq
    %v783 = vshrl.u32 %v782, 7
    %v784 = vsub.s32 0, %v783
    %v785 = vrot.slane %v780, %v784
    %v788 = vrot.slane %v775, 6
    %v789 = vsel %vm152, %v788, 0
    %791 = vmatprep.subr.mxu0 0.0
    %792 = vmatpush1.msra.mxu0 0.0
    %793 = vmatprep.subr.mxu0 0.0
    %794 = vmatpush1.msra.mxu0 0.0
    %795 = vmatprep.subr.mxu0 0.0
    %796 = vmatpush1.msra.mxu0 0.0
    %797 = vmatprep.subr.mxu0 0.0
    %798 = vmatpush1.msra.mxu0 0.0
    %799 = vmatprep.subr.mxu0 0.0
    %800 = vmatpush1.msra.mxu0 0.0
    %801 = vmatprep.subr.mxu0 0.0
    %802 = vmatpush1.msra.mxu0 0.0
    %803 = vmatprep.subr.mxu0 0.0
    %804 = vmatpush1.msra.mxu0 0.0
    %805 = vmatprep.subr.mxu0 0.0
    %806 = vmatpush1.msra.mxu0 0.0
    %807 = vmatprep.subr.mxu0 0.0
    %808 = vmatpush1.msra.mxu0 0.0
    %809 = vmatprep.subr.mxu0 0.0
    %810 = vmatpush1.msra.mxu0 0.0
    %811 = vmatprep.subr.mxu0 0.0
    %812 = vmatpush1.msra.mxu0 0.0
    %813 = vmatprep.subr.mxu0 0.0
    %814 = vmatpush1.msra.mxu0 0.0
    %815 = vmatprep.subr.mxu0 0.0
    %816 = vmatpush1.msra.mxu0 %v779
    %817 = vmatprep.subr.mxu0 0.0
    %818 = vmatpush1.msra.mxu0 %v778
    %819 = vmatprep.subr.mxu0 0.0
    %820 = vmatpush1.msra.mxu0 %v777
    %821 = vmatprep.subr.mxu0 0.0
    %822 = vmatpush1.msra.mxu0 %v776
    %823 = vmatprep.subr.mxu0 0.0
    %824 = vmatpush2.msra.mxu0 0.0
    %825 = vmatprep.subr.mxu0 0.0
    %826 = vmatpush2.msra.mxu0 0.0
    %827 = vmatprep.subr.mxu0 0.0
    %828 = vmatpush2.msra.mxu0 0.0
    %829 = vmatprep.subr.mxu0 0.0
    %830 = vmatpush2.msra.mxu0 0.0
    %831 = vmatprep.subr.mxu0 0.0
    %832 = vmatpush2.msra.mxu0 0.0
    %833 = vmatprep.subr.mxu0 0.0
    %834 = vmatpush2.msra.mxu0 0.0
    %835 = vmatprep.subr.mxu0 0.0
    %836 = vmatpush2.msra.mxu0 0.0
    %837 = vmatprep.subr.mxu0 0.0
    %838 = vmatpush2.msra.mxu0 0.0
    %839 = vmatprep.subr.mxu0 0.0
    %840 = vmatpush2.msra.mxu0 0.0
    %841 = vmatprep.subr.mxu0 0.0
    %842 = vmatpush2.msra.mxu0 0.0
    %843 = vmatprep.subr.mxu0 0.0
    %844 = vmatpush2.msra.mxu0 0.0
    %845 = vmatprep.subr.mxu0 0.0
    %846 = vmatpush2.msra.mxu0 0.0
    %847 = vmatprep.subr.mxu0 0.0
    %848 = vmatpush2.msra.mxu0 0.0
    %849 = vmatprep.subr.mxu0 0.0
    %850 = vmatpush2.msra.mxu0 0.0
    %851 = vmatprep.subr.mxu0 0.0
    %852 = vmatpush2.msra.mxu0 0.0
    %853 = vmatprep.subr.mxu0 0.0
    %854 = vmatpush2.msra.mxu0 0.0
    %855 = vmatprep.mubr.f32.mxu0 0.0
    %856 = vmatmul.mubr.f32.gmra.mxu0 %v789
    %v857 = vpop.f32.mrf.mxu0
    %v858 = vadd.f32 %v785, %v857
    %v859 = vpop.f32.mrf.mxu0
    %860 = vdwg.mxu0
    %861 = vst [vmem:[#allocation7] sm:$0x3] %v858
    // Predicated region
    $region34: #{tpu_custom_call.1} parent=1 // pred_check
      _
    $region35: #{tpu_custom_call.1} parent=1 // pred_check_branch
      %863 = sbr.rel (0) target = $region37
    $region36: #{tpu_custom_call.1} parent=1 // pred_region
      %s865 = ssub.s32 32, 32
      %866 = vsyncadd [#allocation4], %s865
      %s868 = sshll.u32 [#allocation7], 4
      %s869 = int_to_ptr.vmem [resolvable:$true] %s868
      %871 = dma.vmem_to_hbm [thread:$0]  %s869, 32, %s6, [#allocation4]
    $region37: #{tpu_custom_call.1} parent=1 // pred_fallthru
      _
    // Predicated region
    $region38: #{tpu_custom_call.1} parent=1 // pred_check
      _
    $region39: #{tpu_custom_call.1} parent=1 // pred_check_branch
      %873 = sbr.rel (0) target = $region41
    $region40: #{tpu_custom_call.1} parent=1 // pred_region
      %874 = dma.done [#allocation4], 32
    $region41: #{tpu_custom_call.1} parent=1 // pred_fallthru
      _
    %875 = vsyncpa [#allocation3], 1
    %876 = vsyncpa [#allocation6], 1
    %877 = vsyncpa [#allocation4], 1

</llo_original>
